<compile_context>
chip_gen: v7x
topology: tpu7x:2x2x1
jax: 0.10.0
libtpu: 0.0.40
codegen_flags: <defaults>
</compile_context>

<pallas_src>
import functools

import jax
import jax.numpy as jnp
from jax.experimental import pallas as pl
from jax.experimental.pallas import tpu as pltpu


def _round_up(x, m):
    return ((x + m - 1) // m) * m


def _deepnn_kernel(depth, x_ref, z_ref, w_in_ref, b_in_ref, w_h_ref, b_h_ref,
                   w_eps_ref, b_eps_ref, o_ref):
    # Transposed layout: rows (N) on lanes, features on sublanes.
    x = x_ref[...]                                    # [2, tm]
    w_in = w_in_ref[...]                              # [wp, 2]

    # Input layer (K=2): broadcast-FMA on the VPU instead of a degenerate matmul.
    h = (w_in[:, 0:1] * x[0:1, :] + w_in[:, 1:2] * x[1:2, :]
         + b_in_ref[...])                             # [wp, tm]
    h = jnp.maximum(h, 0.0)

    # Hidden layers: depth x (Linear(width, width) + ReLU), lane-dense MXU matmuls.
    for d in range(depth):
        h = jnp.dot(w_h_ref[d], h, preferred_element_type=jnp.float32)
        h = jnp.maximum(h + b_h_ref[d], 0.0)

    # Output layer (N=2) fused with the Z channel select:
    #   result = (w1.h + b1) + z * ((w0 - w1).h + (b0 - b1))
    # done as VPU multiplies + cross-sublane (XLU) width reductions.
    w_eps = w_eps_ref[...]                            # [wp, 2]: col0 = w1, col1 = w0 - w1
    base = jnp.sum(w_eps[:, 0:1] * h, axis=0, keepdims=True) + b_eps_ref[0:1, 0:1]
    sel = jnp.sum(w_eps[:, 1:2] * h, axis=0, keepdims=True) + b_eps_ref[0:1, 1:2]
    o_ref[...] = base + z_ref[...] * sel              # [1, tm] lane-dense store


def deepnn_forward(x, z, params, *, tm=512):
    """x: [N, 2] f32; z: [N, 1] bool (or {0,1}) mask. Returns [N, 1] f32."""
    w_in, b_in, w_h, b_h, w_out, b_out = params
    n = x.shape[0]
    depth, width = w_h.shape[0], w_h.shape[1]
    wp = _round_up(width, 128)                        # pad width: full lanes / MXU minor dim

    # Row tile: multiple of 128, no larger than padded N. Pad N to a tile multiple.
    tm = max(128, min(_round_up(tm, 128), _round_up(n, 128)))
    n_pad = _round_up(n, tm)

    # --- one-time wrapper-side (XLA) layout work -----------------------------
    # Transposed, N-padded inputs: N on the lane axis.
    x_t = jnp.zeros((2, n_pad), jnp.float32).at[:, :n].set(x.astype(jnp.float32).T)
    z_b = z.astype(jnp.bool_).astype(jnp.float32)     # exact {0,1} selection mask
    z_t = jnp.zeros((1, n_pad), jnp.float32).at[:, :n].set(z_b.reshape(1, n))

    # Transposed, width-padded weights (h_T = W^T @ h_T; zero padding is inert
    # through ReLU since padded biases are zero).
    w_in_t = jnp.zeros((wp, 2), jnp.float32).at[:width].set(w_in.T)
    b_in_t = jnp.zeros((wp, 1), jnp.float32).at[:width].set(b_in.reshape(width, 1))
    w_h_t = jnp.zeros((depth, wp, wp), jnp.float32).at[:, :width, :width].set(
        jnp.transpose(w_h, (0, 2, 1)))
    b_h_t = jnp.zeros((depth, wp, 1), jnp.float32).at[:, :width].set(
        jnp.transpose(b_h, (0, 2, 1)))
    # Output layer folded with the channel select.
    w_eps = jnp.zeros((wp, 2), jnp.float32).at[:width, 0].set(w_out[:, 1])
    w_eps = w_eps.at[:width, 1].set(w_out[:, 0] - w_out[:, 1])
    b_eps = jnp.stack([b_out[0, 1], b_out[0, 0] - b_out[0, 1]]).reshape(1, 2)

    # VMEM budget: double-buffered weights + tiles, a few activation slabs, headroom.
    weight_bytes = 4 * (wp * 2 + wp + depth * wp * wp + depth * wp + wp * 2 + 2)
    tile_bytes = 4 * tm * 4                           # x (2 rows) + z + out blocks
    act_bytes = 4 * wp * tm                           # one activation slab
    vmem_limit = int(min(64 << 20,
                         max(32 << 20,
                             2 * (weight_bytes + tile_bytes) + 8 * act_bytes + (4 << 20))))

    kernel = functools.partial(_deepnn_kernel, depth)

    out_t = pl.pallas_call(
        kernel,
        out_shape=jax.ShapeDtypeStruct((1, n_pad), jnp.float32),
        grid_spec=pltpu.PrefetchScalarGridSpec(
            num_scalar_prefetch=0,
            grid=(n_pad // tm,),
            in_specs=[
                pl.BlockSpec((2, tm), lambda i: (0, i)),             # X^T (rows on lanes)
                pl.BlockSpec((1, tm), lambda i: (0, i)),             # Z^T
                pl.BlockSpec((wp, 2), lambda i: (0, 0)),             # W_in^T (padded)
                pl.BlockSpec((wp, 1), lambda i: (0, 0)),             # b_in^T
                pl.BlockSpec((depth, wp, wp), lambda i: (0, 0, 0)),  # W_hidden^T
                pl.BlockSpec((depth, wp, 1), lambda i: (0, 0, 0)),   # b_hidden^T
                pl.BlockSpec((wp, 2), lambda i: (0, 0)),             # [w1 | w0-w1]
                pl.BlockSpec((1, 2), lambda i: (0, 0)),              # [b1 | b0-b1]
            ],
            out_specs=pl.BlockSpec((1, tm), lambda i: (0, i)),       # lane-dense output
        ),
        compiler_params=pltpu.CompilerParams(
            dimension_semantics=("parallel",),
            vmem_limit_bytes=vmem_limit),
    )(x_t, z_t, w_in_t, b_in_t, w_h_t, b_h_t, w_eps, b_eps)

    return out_t[:, :n].T                             # back to [N, 1]


def init_params(key, depth, width):
    """Deterministic synthetic parameters (same shapes as the nn.Linear layers)."""
    keys = jax.random.split(key, 2 * depth + 4)
    # PyTorch Linear stores weight as [out, in]; we keep [in, out] (x @ W + b).
    w_in = jax.random.normal(keys[0], (2, width), jnp.float32) * 0.5
    b_in = jax.random.normal(keys[1], (1, width), jnp.float32) * 0.1
    w_h = jnp.stack([
        jax.random.normal(keys[2 + 2 * d], (width, width), jnp.float32) * (1.0 / width ** 0.5)
        for d in range(depth)
    ])
    b_h = jnp.stack([
        jax.random.normal(keys[3 + 2 * d], (1, width), jnp.float32) * 0.1
        for d in range(depth)
    ])
    w_out = jax.random.normal(keys[2 + 2 * depth], (width, 2), jnp.float32) * (1.0 / width ** 0.5)
    b_out = jax.random.normal(keys[3 + 2 * depth], (1, 2), jnp.float32) * 0.1
    return (w_in, b_in, w_h, b_h, w_out, b_out)


def deepnn_reference(x, z_bool, params):
    w_in, b_in, w_h, b_h, w_out, b_out = params
    h = jnp.maximum(x @ w_in + b_in, 0.0)
    for d in range(w_h.shape[0]):
        h = jnp.maximum(h @ w_h[d] + b_h[d], 0.0)
    out = h @ w_out + b_out
    return jnp.where(z_bool, out[:, 0:1], out[:, 1:2])


if __name__ == "__main__":
    key = jax.random.PRNGKey(0)
    k_x, k_z, k_p = jax.random.split(key, 3)

    # Small config: Nx*Ny = 16*16 = 256 grid points, width=32, depth=2.
    N, width, depth = 256, 32, 2

    x = jax.random.uniform(k_x, (N, 2), jnp.float32, -1.0, 1.0)
    z_bool = jax.random.bernoulli(k_z, 0.5, (N, 1))   # PyTorch bool mask Z

    params = init_params(k_p, depth, width)

    out = deepnn_forward(x, z_bool, params)
    out = jax.block_until_ready(out)

    ref = deepnn_reference(x, z_bool, params)
    assert out.shape == (N, 1)
    assert jnp.allclose(out, ref, atol=1e-4, rtol=1e-4)

    print("KERNEL_OK")
</pallas_src>

<mosaic_0001>
module attributes {stable_mosaic.version = 11 : i64} {
  func.func @_deepnn_kernel(%arg0: i32, %arg1: memref<2x256xf32, #tpu.memory_space<vmem>>, %arg2: memref<1x256xf32, #tpu.memory_space<vmem>>, %arg3: memref<128x2xf32, #tpu.memory_space<vmem>>, %arg4: memref<128x1xf32, #tpu.memory_space<vmem>>, %arg5: memref<2x128x128xf32, #tpu.memory_space<vmem>>, %arg6: memref<2x128x1xf32, #tpu.memory_space<vmem>>, %arg7: memref<128x2xf32, #tpu.memory_space<vmem>>, %arg8: memref<1x2xf32, #tpu.memory_space<vmem>>, %arg9: memref<1x256xf32, #tpu.memory_space<vmem>>) attributes {dimension_semantics = [#tpu.dimension_semantics<parallel>], iteration_bounds = array<i64: 1>, scalar_prefetch = 0 : i64, scratch_operands = 0 : i64, tpu.core_type = #tpu.core_type<tc>, window_params = [{transform_indices = @transform_0, window_bounds = array<i64: 2, 256>}, {transform_indices = @transform_1, window_bounds = array<i64: 1, 256>}, {pipeline_mode = #tpu.pipeline_mode<synchronous>, transform_indices = @transform_2, window_bounds = array<i64: 128, 2>}, {pipeline_mode = #tpu.pipeline_mode<synchronous>, transform_indices = @transform_3, window_bounds = array<i64: 128, 1>}, {pipeline_mode = #tpu.pipeline_mode<synchronous>, transform_indices = @transform_4, window_bounds = array<i64: 2, 128, 128>}, {pipeline_mode = #tpu.pipeline_mode<synchronous>, transform_indices = @transform_5, window_bounds = array<i64: 2, 128, 1>}, {pipeline_mode = #tpu.pipeline_mode<synchronous>, transform_indices = @transform_6, window_bounds = array<i64: 128, 2>}, {pipeline_mode = #tpu.pipeline_mode<synchronous>, transform_indices = @transform_7, window_bounds = array<i64: 1, 2>}, {transform_indices = @transform_8, window_bounds = array<i64: 1, 256>}]} {
    %c0 = arith.constant 0 : index
    %c0_0 = arith.constant 0 : index
    %0 = vector.load %arg1[%c0, %c0_0] : memref<2x256xf32, #tpu.memory_space<vmem>>, vector<2x256xf32>
    %c0_1 = arith.constant 0 : index
    %c0_2 = arith.constant 0 : index
    %1 = vector.load %arg3[%c0_1, %c0_2] : memref<128x2xf32, #tpu.memory_space<vmem>>, vector<128x2xf32>
    %2 = vector.extract_strided_slice %1 {offsets = [0, 0], sizes = [128, 1], strides = [1, 1]} : vector<128x2xf32> to vector<128x1xf32>
    %3 = vector.extract_strided_slice %0 {offsets = [0, 0], sizes = [1, 256], strides = [1, 1]} : vector<2x256xf32> to vector<1x256xf32>
    %4 = vector.broadcast %2 : vector<128x1xf32> to vector<128x256xf32>
    %5 = vector.broadcast %3 : vector<1x256xf32> to vector<128x256xf32>
    %6 = arith.mulf %4, %5 : vector<128x256xf32>
    %7 = vector.extract_strided_slice %1 {offsets = [0, 1], sizes = [128, 1], strides = [1, 1]} : vector<128x2xf32> to vector<128x1xf32>
    %8 = vector.extract_strided_slice %0 {offsets = [1, 0], sizes = [1, 256], strides = [1, 1]} : vector<2x256xf32> to vector<1x256xf32>
    %9 = vector.broadcast %7 : vector<128x1xf32> to vector<128x256xf32>
    %10 = vector.broadcast %8 : vector<1x256xf32> to vector<128x256xf32>
    %11 = arith.mulf %9, %10 : vector<128x256xf32>
    %12 = arith.addf %6, %11 : vector<128x256xf32>
    %c0_3 = arith.constant 0 : index
    %c0_4 = arith.constant 0 : index
    %13 = vector.load %arg4[%c0_3, %c0_4] : memref<128x1xf32, #tpu.memory_space<vmem>>, vector<128x1xf32>
    %14 = vector.broadcast %13 : vector<128x1xf32> to vector<128x256xf32>
    %15 = arith.addf %12, %14 : vector<128x256xf32>
    %cst = arith.constant 0.000000e+00 : f32
    %16 = vector.broadcast %cst : f32 to vector<128x256xf32>
    %17 = arith.maximumf %15, %16 : vector<128x256xf32>
    %c0_5 = arith.constant 0 : index
    %c0_6 = arith.constant 0 : index
    %c0_7 = arith.constant 0 : index
    %18 = vector.load %arg5[%c0_5, %c0_6, %c0_7] : memref<2x128x128xf32, #tpu.memory_space<vmem>>, vector<1x128x128xf32>
    %19 = vector.shape_cast %18 : vector<1x128x128xf32> to vector<128x128xf32>
    %cst_8 = arith.constant dense<0.000000e+00> : vector<128x256xf32>
    %20 = tpu.matmul %19, %17, %cst_8 {dimension_numbers = #tpu.dot_dimension_numbers<[1], [0], [0], [1], [0, 0, 1, 1], [], []>} : vector<128x128xf32>, vector<128x256xf32>, vector<128x256xf32> -> vector<128x256xf32>
    %c0_9 = arith.constant 0 : index
    %c0_10 = arith.constant 0 : index
    %c0_11 = arith.constant 0 : index
    %21 = vector.load %arg6[%c0_9, %c0_10, %c0_11] : memref<2x128x1xf32, #tpu.memory_space<vmem>>, vector<1x128x1xf32>
    %22 = vector.shape_cast %21 : vector<1x128x1xf32> to vector<128x1xf32>
    %23 = vector.broadcast %22 : vector<128x1xf32> to vector<128x256xf32>
    %24 = arith.addf %20, %23 : vector<128x256xf32>
    %cst_12 = arith.constant 0.000000e+00 : f32
    %25 = vector.broadcast %cst_12 : f32 to vector<128x256xf32>
    %26 = arith.maximumf %24, %25 : vector<128x256xf32>
    %c1 = arith.constant 1 : index
    %c0_13 = arith.constant 0 : index
    %c0_14 = arith.constant 0 : index
    %27 = vector.load %arg5[%c1, %c0_13, %c0_14] : memref<2x128x128xf32, #tpu.memory_space<vmem>>, vector<1x128x128xf32>
    %28 = vector.shape_cast %27 : vector<1x128x128xf32> to vector<128x128xf32>
    %cst_15 = arith.constant dense<0.000000e+00> : vector<128x256xf32>
    %29 = tpu.matmul %28, %26, %cst_15 {dimension_numbers = #tpu.dot_dimension_numbers<[1], [0], [0], [1], [0, 0, 1, 1], [], []>} : vector<128x128xf32>, vector<128x256xf32>, vector<128x256xf32> -> vector<128x256xf32>
    %c1_16 = arith.constant 1 : index
    %c0_17 = arith.constant 0 : index
    %c0_18 = arith.constant 0 : index
    %30 = vector.load %arg6[%c1_16, %c0_17, %c0_18] : memref<2x128x1xf32, #tpu.memory_space<vmem>>, vector<1x128x1xf32>
    %31 = vector.shape_cast %30 : vector<1x128x1xf32> to vector<128x1xf32>
    %32 = vector.broadcast %31 : vector<128x1xf32> to vector<128x256xf32>
    %33 = arith.addf %29, %32 : vector<128x256xf32>
    %cst_19 = arith.constant 0.000000e+00 : f32
    %34 = vector.broadcast %cst_19 : f32 to vector<128x256xf32>
    %35 = arith.maximumf %33, %34 : vector<128x256xf32>
    %c0_20 = arith.constant 0 : index
    %c0_21 = arith.constant 0 : index
    %36 = vector.load %arg7[%c0_20, %c0_21] : memref<128x2xf32, #tpu.memory_space<vmem>>, vector<128x2xf32>
    %37 = vector.extract_strided_slice %36 {offsets = [0, 0], sizes = [128, 1], strides = [1, 1]} : vector<128x2xf32> to vector<128x1xf32>
    %38 = vector.broadcast %37 : vector<128x1xf32> to vector<128x256xf32>
    %39 = arith.mulf %38, %35 : vector<128x256xf32>
    %cst_22 = arith.constant dense<0.000000e+00> : vector<256xf32>
    %40 = vector.multi_reduction <add>, %39, %cst_22 [0] : vector<128x256xf32> to vector<256xf32>
    %41 = vector.shape_cast %40 : vector<256xf32> to vector<1x256xf32>
    %c0_23 = arith.constant 0 : index
    %c0_24 = arith.constant 0 : index
    %42 = vector.load %arg8[%c0_23, %c0_24] : memref<1x2xf32, #tpu.memory_space<vmem>>, vector<1x1xf32>
    %43 = vector.broadcast %42 : vector<1x1xf32> to vector<1x256xf32>
    %44 = arith.addf %41, %43 : vector<1x256xf32>
    %45 = vector.extract_strided_slice %36 {offsets = [0, 1], sizes = [128, 1], strides = [1, 1]} : vector<128x2xf32> to vector<128x1xf32>
    %46 = vector.broadcast %45 : vector<128x1xf32> to vector<128x256xf32>
    %47 = arith.mulf %46, %35 : vector<128x256xf32>
    %cst_25 = arith.constant dense<0.000000e+00> : vector<256xf32>
    %48 = vector.multi_reduction <add>, %47, %cst_25 [0] : vector<128x256xf32> to vector<256xf32>
    %49 = vector.shape_cast %48 : vector<256xf32> to vector<1x256xf32>
    %c0_26 = arith.constant 0 : index
    %c1_27 = arith.constant 1 : index
    %50 = vector.load %arg8[%c0_26, %c1_27] : memref<1x2xf32, #tpu.memory_space<vmem>>, vector<1x1xf32>
    %51 = vector.broadcast %50 : vector<1x1xf32> to vector<1x256xf32>
    %52 = arith.addf %49, %51 : vector<1x256xf32>
    %c0_28 = arith.constant 0 : index
    %c0_29 = arith.constant 0 : index
    %53 = vector.load %arg2[%c0_28, %c0_29] : memref<1x256xf32, #tpu.memory_space<vmem>>, vector<1x256xf32>
    %54 = arith.mulf %53, %52 : vector<1x256xf32>
    %55 = arith.addf %44, %54 : vector<1x256xf32>
    %c0_30 = arith.constant 0 : index
    %c0_31 = arith.constant 0 : index
    %56 = vector.load %arg9[%c0_30, %c0_31] : memref<1x256xf32, #tpu.memory_space<vmem>>, vector<1x256xf32>
    tpu.vector_store %arg9[%c0_30, %c0_31], %55 {strides = array<i32>} : memref<1x256xf32, #tpu.memory_space<vmem>>, vector<1x256xf32>,
    return
  }
  func.func @transform_0(%arg0: i32) -> (i32, i32) {
    %c0_i32 = arith.constant 0 : i32
    %c0_i32_0 = arith.constant 0 : i32
    return %c0_i32, %arg0 : i32, i32
  }
  func.func @transform_1(%arg0: i32) -> (i32, i32) {
    %c0_i32 = arith.constant 0 : i32
    %c0_i32_0 = arith.constant 0 : i32
    return %c0_i32, %arg0 : i32, i32
  }
  func.func @transform_2(%arg0: i32) -> (i32, i32) {
    %c0_i32 = arith.constant 0 : i32
    %c0_i32_0 = arith.constant 0 : i32
    %c0_i32_1 = arith.constant 0 : i32
    return %c0_i32, %c0_i32_0 : i32, i32
  }
  func.func @transform_3(%arg0: i32) -> (i32, i32) {
    %c0_i32 = arith.constant 0 : i32
    %c0_i32_0 = arith.constant 0 : i32
    %c0_i32_1 = arith.constant 0 : i32
    return %c0_i32, %c0_i32_0 : i32, i32
  }
  func.func @transform_4(%arg0: i32) -> (i32, i32, i32) {
    %c0_i32 = arith.constant 0 : i32
    %c0_i32_0 = arith.constant 0 : i32
    %c0_i32_1 = arith.constant 0 : i32
    %c0_i32_2 = arith.constant 0 : i32
    return %c0_i32, %c0_i32_0, %c0_i32_1 : i32, i32, i32
  }
  func.func @transform_5(%arg0: i32) -> (i32, i32, i32) {
    %c0_i32 = arith.constant 0 : i32
    %c0_i32_0 = arith.constant 0 : i32
    %c0_i32_1 = arith.constant 0 : i32
    %c0_i32_2 = arith.constant 0 : i32
    return %c0_i32, %c0_i32_0, %c0_i32_1 : i32, i32, i32
  }
  func.func @transform_6(%arg0: i32) -> (i32, i32) {
    %c0_i32 = arith.constant 0 : i32
    %c0_i32_0 = arith.constant 0 : i32
    %c0_i32_1 = arith.constant 0 : i32
    return %c0_i32, %c0_i32_0 : i32, i32
  }
  func.func @transform_7(%arg0: i32) -> (i32, i32) {
    %c0_i32 = arith.constant 0 : i32
    %c0_i32_0 = arith.constant 0 : i32
    %c0_i32_1 = arith.constant 0 : i32
    return %c0_i32, %c0_i32_0 : i32, i32
  }
  func.func @transform_8(%arg0: i32) -> (i32, i32) {
    %c0_i32 = arith.constant 0 : i32
    %c0_i32_0 = arith.constant 0 : i32
    return %c0_i32, %arg0 : i32, i32
  }
}

</mosaic_0001>

<llo_original>
// kernel: tpu_custom_call.1
$region0: #{tpu_custom_call.1}
  #allocation0 [shape = 'u32[]', space=smem, size = 0x4, offset = 0x4, fixed_abs, tag = 'smem constant byte address 0x4 - core index']
  #allocation1 [shape = 'u32[144,128]{1,0:T(1,128)}', space=vmem, size = 0x12000, scoped, tag = 'internal scratch']
  %s0 = inlined_call_operand.vmem [shape: f32[2,256], index: 0, kind: input, shape index: {}]
  %s1 = inlined_call_operand.vmem [shape: f32[1,256], index: 1, kind: input, shape index: {}]
  %s2 = inlined_call_operand.vmem [shape: f32[128,2], index: 2, kind: input, shape index: {}]
  %s3 = inlined_call_operand.vmem [shape: f32[128,1], index: 3, kind: input, shape index: {}]
  %s4 = inlined_call_operand.vmem [shape: f32[2,128,128], index: 4, kind: input, shape index: {}]
  %s5 = inlined_call_operand.vmem [shape: f32[2,128,1], index: 5, kind: input, shape index: {}]
  %s6 = inlined_call_operand.vmem [shape: f32[128,2], index: 6, kind: input, shape index: {}]
  %s7 = inlined_call_operand.vmem [shape: f32[1,2], index: 7, kind: input, shape index: {}]
  %s8 = inlined_call_operand.hbm [shape: f32[1,256], index: 8, kind: output, shape index: {}]
  %s9 = sld [smem:[#allocation0]]
  $region42: #{tpu_custom_call.1} parent=0
    _
  %s11 = ssub.s32 1, %s9
  %s12 = scalar_select 0, %s11, %s9
  $region1: #{tpu_custom_call.1} parent=0
    #allocation2 [shape = 'u8[1024]{0}', space=vmem, size = 0x400, scoped, tag = 'output window, operand 0, single buffered']
    #allocation3 [shape = 's32[1]{0}', space=sflag, size = 0x4, scoped, tag = 'scoped memory for tpu_custom_call.1']
    %13 = vsyncpa [#allocation3], 0
    // Predicated region
    $region2: #{tpu_custom_call.1} parent=1 // pred_check
      _
    $region3: #{tpu_custom_call.1} parent=1 // pred_check_branch
      %15 = sbr.rel (0) target = $region5
    $region4: #{tpu_custom_call.1} parent=1 // pred_region
      _
    $region5: #{tpu_custom_call.1} parent=1 // pred_fallthru
      _
    // Predicated region
    $region6: #{tpu_custom_call.1} parent=1 // pred_check
      _
    $region7: #{tpu_custom_call.1} parent=1 // pred_check_branch
      %17 = sbr.rel (0) target = $region9
    $region8: #{tpu_custom_call.1} parent=1 // pred_region
      _
    $region9: #{tpu_custom_call.1} parent=1 // pred_fallthru
      _
    // Predicated region
    $region10: #{tpu_custom_call.1} parent=1 // pred_check
      _
    $region11: #{tpu_custom_call.1} parent=1 // pred_check_branch
      %19 = sbr.rel (0) target = $region13
    $region12: #{tpu_custom_call.1} parent=1 // pred_region
      _
    $region13: #{tpu_custom_call.1} parent=1 // pred_fallthru
      _
    // Predicated region
    $region14: #{tpu_custom_call.1} parent=1 // pred_check
      _
    $region15: #{tpu_custom_call.1} parent=1 // pred_check_branch
      %21 = sbr.rel (0) target = $region17
    $region16: #{tpu_custom_call.1} parent=1 // pred_region
      _
    $region17: #{tpu_custom_call.1} parent=1 // pred_fallthru
      _
    // Predicated region
    $region18: #{tpu_custom_call.1} parent=1 // pred_check
      _
    $region19: #{tpu_custom_call.1} parent=1 // pred_check_branch
      %23 = sbr.rel (0) target = $region21
    $region20: #{tpu_custom_call.1} parent=1 // pred_region
      _
    $region21: #{tpu_custom_call.1} parent=1 // pred_fallthru
      _
    // Predicated region
    $region22: #{tpu_custom_call.1} parent=1 // pred_check
      _
    $region23: #{tpu_custom_call.1} parent=1 // pred_check_branch
      %25 = sbr.rel (0) target = $region25
    $region24: #{tpu_custom_call.1} parent=1 // pred_region
      _
    $region25: #{tpu_custom_call.1} parent=1 // pred_fallthru
      _
    // Predicated region
    $region26: #{tpu_custom_call.1} parent=1 // pred_check
      _
    $region27: #{tpu_custom_call.1} parent=1 // pred_check_branch
      %27 = sbr.rel (0) target = $region29
    $region28: #{tpu_custom_call.1} parent=1 // pred_region
      _
    $region29: #{tpu_custom_call.1} parent=1 // pred_fallthru
      _
    // Predicated region
    $region30: #{tpu_custom_call.1} parent=1 // pred_check
      _
    $region31: #{tpu_custom_call.1} parent=1 // pred_check_branch
      %29 = sbr.rel (0) target = $region33
    $region32: #{tpu_custom_call.1} parent=1 // pred_region
      _
    $region33: #{tpu_custom_call.1} parent=1 // pred_fallthru
      _
    %v30 = vld [vmem:[%s0] sm:$0xf]
    %v31 = vld [vmem:[%s2] sm:$0xff]
    %v32 = vld [vmem:[%s2 + $0x8] sm:$0xff]
    %v33 = vld [vmem:[%s2 + $0x10] sm:$0xff]
    %v34 = vld [vmem:[%s2 + $0x18] sm:$0xff]
    %v35 = vld [vmem:[%s2 + $0x20] sm:$0xff]
    %v36 = vld [vmem:[%s2 + $0x28] sm:$0xff]
    %v37 = vld [vmem:[%s2 + $0x30] sm:$0xff]
    %v38 = vld [vmem:[%s2 + $0x38] sm:$0xff]
    %v39 = vld [vmem:[%s2 + $0x40] sm:$0xff]
    %v40 = vld [vmem:[%s2 + $0x48] sm:$0xff]
    %v41 = vld [vmem:[%s2 + $0x50] sm:$0xff]
    %v42 = vld [vmem:[%s2 + $0x58] sm:$0xff]
    %v43 = vld [vmem:[%s2 + $0x60] sm:$0xff]
    %v44 = vld [vmem:[%s2 + $0x68] sm:$0xff]
    %v45 = vld [vmem:[%s2 + $0x70] sm:$0xff]
    %v46 = vld [vmem:[%s2 + $0x78] sm:$0xff]
    %48 = vset.pattern.permute.xlu0 0
    %49 = vperm.xlu0 %48, %v31
    %v50 = vpop.permute.xlu0 %49
    %53 = vset.pattern.permute.xlu0 0
    %54 = vperm.xlu0 %53, %v32
    %v55 = vpop.permute.xlu0 %54
    %58 = vset.pattern.permute.xlu0 0
    %59 = vperm.xlu0 %58, %v33
    %v60 = vpop.permute.xlu0 %59
    %63 = vset.pattern.permute.xlu0 0
    %64 = vperm.xlu0 %63, %v34
    %v65 = vpop.permute.xlu0 %64
    %68 = vset.pattern.permute.xlu0 0
    %69 = vperm.xlu0 %68, %v35
    %v70 = vpop.permute.xlu0 %69
    %73 = vset.pattern.permute.xlu0 0
    %74 = vperm.xlu0 %73, %v36
    %v75 = vpop.permute.xlu0 %74
    %78 = vset.pattern.permute.xlu0 0
    %79 = vperm.xlu0 %78, %v37
    %v80 = vpop.permute.xlu0 %79
    %83 = vset.pattern.permute.xlu0 0
    %84 = vperm.xlu0 %83, %v38
    %v85 = vpop.permute.xlu0 %84
    %88 = vset.pattern.permute.xlu0 0
    %89 = vperm.xlu0 %88, %v39
    %v90 = vpop.permute.xlu0 %89
    %93 = vset.pattern.permute.xlu0 0
    %94 = vperm.xlu0 %93, %v40
    %v95 = vpop.permute.xlu0 %94
    %98 = vset.pattern.permute.xlu0 0
    %99 = vperm.xlu0 %98, %v41
    %v100 = vpop.permute.xlu0 %99
    %103 = vset.pattern.permute.xlu0 0
    %104 = vperm.xlu0 %103, %v42
    %v105 = vpop.permute.xlu0 %104
    %108 = vset.pattern.permute.xlu0 0
    %109 = vperm.xlu0 %108, %v43
    %v110 = vpop.permute.xlu0 %109
    %113 = vset.pattern.permute.xlu0 0
    %114 = vperm.xlu0 %113, %v44
    %v115 = vpop.permute.xlu0 %114
    %118 = vset.pattern.permute.xlu0 0
    %119 = vperm.xlu0 %118, %v45
    %v120 = vpop.permute.xlu0 %119
    %123 = vset.pattern.permute.xlu0 0
    %124 = vperm.xlu0 %123, %v46
    %v125 = vpop.permute.xlu0 %124
    %v128 = vlaneseq
    %v129 = vshrl.u32 %v128, 7
    %v130 = vsub.s32 0, %v129
    %v131 = vrot.slane %v30, %v130
    %v132 = vlaneseq
    %v133 = vshrl.u32 %v132, 7
    %v134 = vsub.s32 2, %v133
    %v135 = vrot.slane %v30, %v134
    %v138 = vlaneseq
    %v139 = vshrl.u32 %v138, 7
    %v140 = vsub.s32 0, %v139
    %v141 = vrot.slane %v131, %v140
    %v142 = vlaneseq
    %v143 = vshrl.u32 %v142, 7
    %v144 = vsub.s32 0, %v143
    %v145 = vrot.slane %v135, %v144
    %v146 = vmul.f32 %v50, %v141
    %v147 = vmul.f32 %v50, %v145
    %v148 = vmul.f32 %v55, %v141
    %v149 = vmul.f32 %v55, %v145
    %v150 = vmul.f32 %v60, %v141
    %v151 = vmul.f32 %v60, %v145
    %v152 = vmul.f32 %v65, %v141
    %v153 = vmul.f32 %v65, %v145
    %v154 = vmul.f32 %v70, %v141
    %v155 = vmul.f32 %v70, %v145
    %v156 = vmul.f32 %v75, %v141
    %v157 = vmul.f32 %v75, %v145
    %v158 = vmul.f32 %v80, %v141
    %v159 = vmul.f32 %v80, %v145
    %v160 = vmul.f32 %v85, %v141
    %v161 = vmul.f32 %v85, %v145
    %v162 = vmul.f32 %v90, %v141
    %v163 = vmul.f32 %v90, %v145
    %v164 = vmul.f32 %v95, %v141
    %v165 = vmul.f32 %v95, %v145
    %v166 = vmul.f32 %v100, %v141
    %v167 = vmul.f32 %v100, %v145
    %v168 = vmul.f32 %v105, %v141
    %v169 = vmul.f32 %v105, %v145
    %v170 = vmul.f32 %v110, %v141
    %v171 = vmul.f32 %v110, %v145
    %v172 = vmul.f32 %v115, %v141
    %v173 = vmul.f32 %v115, %v145
    %v174 = vmul.f32 %v120, %v141
    %v175 = vmul.f32 %v120, %v145
    %v176 = vmul.f32 %v125, %v141
    %v177 = vmul.f32 %v125, %v145
    %178 = vset.pattern.permute.xlu0 1
    %179 = vperm.xlu0 %178, %v31
    %v180 = vpop.permute.xlu0 %179
    %182 = vset.pattern.permute.xlu0 1
    %183 = vperm.xlu0 %182, %v32
    %v184 = vpop.permute.xlu0 %183
    %186 = vset.pattern.permute.xlu0 1
    %187 = vperm.xlu0 %186, %v33
    %v188 = vpop.permute.xlu0 %187
    %190 = vset.pattern.permute.xlu0 1
    %191 = vperm.xlu0 %190, %v34
    %v192 = vpop.permute.xlu0 %191
    %194 = vset.pattern.permute.xlu0 1
    %195 = vperm.xlu0 %194, %v35
    %v196 = vpop.permute.xlu0 %195
    %198 = vset.pattern.permute.xlu0 1
    %199 = vperm.xlu0 %198, %v36
    %v200 = vpop.permute.xlu0 %199
    %202 = vset.pattern.permute.xlu0 1
    %203 = vperm.xlu0 %202, %v37
    %v204 = vpop.permute.xlu0 %203
    %206 = vset.pattern.permute.xlu0 1
    %207 = vperm.xlu0 %206, %v38
    %v208 = vpop.permute.xlu0 %207
    %210 = vset.pattern.permute.xlu0 1
    %211 = vperm.xlu0 %210, %v39
    %v212 = vpop.permute.xlu0 %211
    %214 = vset.pattern.permute.xlu0 1
    %215 = vperm.xlu0 %214, %v40
    %v216 = vpop.permute.xlu0 %215
    %218 = vset.pattern.permute.xlu0 1
    %219 = vperm.xlu0 %218, %v41
    %v220 = vpop.permute.xlu0 %219
    %222 = vset.pattern.permute.xlu0 1
    %223 = vperm.xlu0 %222, %v42
    %v224 = vpop.permute.xlu0 %223
    %226 = vset.pattern.permute.xlu0 1
    %227 = vperm.xlu0 %226, %v43
    %v228 = vpop.permute.xlu0 %227
    %230 = vset.pattern.permute.xlu0 1
    %231 = vperm.xlu0 %230, %v44
    %v232 = vpop.permute.xlu0 %231
    %234 = vset.pattern.permute.xlu0 1
    %235 = vperm.xlu0 %234, %v45
    %v236 = vpop.permute.xlu0 %235
    %238 = vset.pattern.permute.xlu0 1
    %239 = vperm.xlu0 %238, %v46
    %v240 = vpop.permute.xlu0 %239
    %v242 = vlaneseq
    %v243 = vshrl.u32 %v242, 7
    %v244 = vsub.s32 1, %v243
    %v245 = vrot.slane %v30, %v244
    %v246 = vlaneseq
    %v247 = vshrl.u32 %v246, 7
    %v248 = vsub.s32 3, %v247
    %v249 = vrot.slane %v30, %v248
    %v252 = vlaneseq
    %v253 = vshrl.u32 %v252, 7
    %v254 = vsub.s32 1, %v253
    %v255 = vrot.slane %v245, %v254
    %v256 = vlaneseq
    %v257 = vshrl.u32 %v256, 7
    %v258 = vsub.s32 1, %v257
    %v259 = vrot.slane %v249, %v258
    %v260 = vmul.f32 %v180, %v255
    %v261 = vmul.f32 %v180, %v259
    %v262 = vmul.f32 %v184, %v255
    %v263 = vmul.f32 %v184, %v259
    %v264 = vmul.f32 %v188, %v255
    %v265 = vmul.f32 %v188, %v259
    %v266 = vmul.f32 %v192, %v255
    %v267 = vmul.f32 %v192, %v259
    %v268 = vmul.f32 %v196, %v255
    %v269 = vmul.f32 %v196, %v259
    %v270 = vmul.f32 %v200, %v255
    %v271 = vmul.f32 %v200, %v259
    %v272 = vmul.f32 %v204, %v255
    %v273 = vmul.f32 %v204, %v259
    %v274 = vmul.f32 %v208, %v255
    %v275 = vmul.f32 %v208, %v259
    %v276 = vmul.f32 %v212, %v255
    %v277 = vmul.f32 %v212, %v259
    %v278 = vmul.f32 %v216, %v255
    %v279 = vmul.f32 %v216, %v259
    %v280 = vmul.f32 %v220, %v255
    %v281 = vmul.f32 %v220, %v259
    %v282 = vmul.f32 %v224, %v255
    %v283 = vmul.f32 %v224, %v259
    %v284 = vmul.f32 %v228, %v255
    %v285 = vmul.f32 %v228, %v259
    %v286 = vmul.f32 %v232, %v255
    %v287 = vmul.f32 %v232, %v259
    %v288 = vmul.f32 %v236, %v255
    %v289 = vmul.f32 %v236, %v259
    %v290 = vmul.f32 %v240, %v255
    %v291 = vmul.f32 %v240, %v259
    %v292 = vadd.f32 %v146, %v260
    %v293 = vadd.f32 %v147, %v261
    %v294 = vadd.f32 %v148, %v262
    %v295 = vadd.f32 %v149, %v263
    %v296 = vadd.f32 %v150, %v264
    %v297 = vadd.f32 %v151, %v265
    %v298 = vadd.f32 %v152, %v266
    %v299 = vadd.f32 %v153, %v267
    %v300 = vadd.f32 %v154, %v268
    %v301 = vadd.f32 %v155, %v269
    %v302 = vadd.f32 %v156, %v270
    %v303 = vadd.f32 %v157, %v271
    %v304 = vadd.f32 %v158, %v272
    %v305 = vadd.f32 %v159, %v273
    %v306 = vadd.f32 %v160, %v274
    %v307 = vadd.f32 %v161, %v275
    %v308 = vadd.f32 %v162, %v276
    %v309 = vadd.f32 %v163, %v277
    %v310 = vadd.f32 %v164, %v278
    %v311 = vadd.f32 %v165, %v279
    %v312 = vadd.f32 %v166, %v280
    %v313 = vadd.f32 %v167, %v281
    %v314 = vadd.f32 %v168, %v282
    %v315 = vadd.f32 %v169, %v283
    %v316 = vadd.f32 %v170, %v284
    %v317 = vadd.f32 %v171, %v285
    %v318 = vadd.f32 %v172, %v286
    %v319 = vadd.f32 %v173, %v287
    %v320 = vadd.f32 %v174, %v288
    %v321 = vadd.f32 %v175, %v289
    %v322 = vadd.f32 %v176, %v290
    %v323 = vadd.f32 %v177, %v291
    %v324 = vld [vmem:[%s3] sm:$0xff]
    %v325 = vld [vmem:[%s3 + $0x8] sm:$0xff]
    %v326 = vld [vmem:[%s3 + $0x10] sm:$0xff]
    %v327 = vld [vmem:[%s3 + $0x18] sm:$0xff]
    %v328 = vld [vmem:[%s3 + $0x20] sm:$0xff]
    %v329 = vld [vmem:[%s3 + $0x28] sm:$0xff]
    %v330 = vld [vmem:[%s3 + $0x30] sm:$0xff]
    %v331 = vld [vmem:[%s3 + $0x38] sm:$0xff]
    %v332 = vld [vmem:[%s3 + $0x40] sm:$0xff]
    %v333 = vld [vmem:[%s3 + $0x48] sm:$0xff]
    %v334 = vld [vmem:[%s3 + $0x50] sm:$0xff]
    %v335 = vld [vmem:[%s3 + $0x58] sm:$0xff]
    %v336 = vld [vmem:[%s3 + $0x60] sm:$0xff]
    %v337 = vld [vmem:[%s3 + $0x68] sm:$0xff]
    %v338 = vld [vmem:[%s3 + $0x70] sm:$0xff]
    %v339 = vld [vmem:[%s3 + $0x78] sm:$0xff]
    %341 = vset.pattern.permute.xlu0 0
    %342 = vperm.xlu0 %341, %v324
    %v343 = vpop.permute.xlu0 %342
    %346 = vset.pattern.permute.xlu0 0
    %347 = vperm.xlu0 %346, %v325
    %v348 = vpop.permute.xlu0 %347
    %351 = vset.pattern.permute.xlu0 0
    %352 = vperm.xlu0 %351, %v326
    %v353 = vpop.permute.xlu0 %352
    %356 = vset.pattern.permute.xlu0 0
    %357 = vperm.xlu0 %356, %v327
    %v358 = vpop.permute.xlu0 %357
    %361 = vset.pattern.permute.xlu0 0
    %362 = vperm.xlu0 %361, %v328
    %v363 = vpop.permute.xlu0 %362
    %366 = vset.pattern.permute.xlu0 0
    %367 = vperm.xlu0 %366, %v329
    %v368 = vpop.permute.xlu0 %367
    %371 = vset.pattern.permute.xlu0 0
    %372 = vperm.xlu0 %371, %v330
    %v373 = vpop.permute.xlu0 %372
    %376 = vset.pattern.permute.xlu0 0
    %377 = vperm.xlu0 %376, %v331
    %v378 = vpop.permute.xlu0 %377
    %381 = vset.pattern.permute.xlu0 0
    %382 = vperm.xlu0 %381, %v332
    %v383 = vpop.permute.xlu0 %382
    %386 = vset.pattern.permute.xlu0 0
    %387 = vperm.xlu0 %386, %v333
    %v388 = vpop.permute.xlu0 %387
    %391 = vset.pattern.permute.xlu0 0
    %392 = vperm.xlu0 %391, %v334
    %v393 = vpop.permute.xlu0 %392
    %396 = vset.pattern.permute.xlu0 0
    %397 = vperm.xlu0 %396, %v335
    %v398 = vpop.permute.xlu0 %397
    %401 = vset.pattern.permute.xlu0 0
    %402 = vperm.xlu0 %401, %v336
    %v403 = vpop.permute.xlu0 %402
    %406 = vset.pattern.permute.xlu0 0
    %407 = vperm.xlu0 %406, %v337
    %v408 = vpop.permute.xlu0 %407
    %411 = vset.pattern.permute.xlu0 0
    %412 = vperm.xlu0 %411, %v338
    %v413 = vpop.permute.xlu0 %412
    %416 = vset.pattern.permute.xlu0 0
    %417 = vperm.xlu0 %416, %v339
    %v418 = vpop.permute.xlu0 %417
    %v420 = vadd.f32 %v292, %v343
    %v421 = vadd.f32 %v293, %v343
    %v422 = vadd.f32 %v294, %v348
    %v423 = vadd.f32 %v295, %v348
    %v424 = vadd.f32 %v296, %v353
    %v425 = vadd.f32 %v297, %v353
    %v426 = vadd.f32 %v298, %v358
    %v427 = vadd.f32 %v299, %v358
    %v428 = vadd.f32 %v300, %v363
    %v429 = vadd.f32 %v301, %v363
    %v430 = vadd.f32 %v302, %v368
    %v431 = vadd.f32 %v303, %v368
    %v432 = vadd.f32 %v304, %v373
    %v433 = vadd.f32 %v305, %v373
    %v434 = vadd.f32 %v306, %v378
    %v435 = vadd.f32 %v307, %v378
    %v436 = vadd.f32 %v308, %v383
    %v437 = vadd.f32 %v309, %v383
    %v438 = vadd.f32 %v310, %v388
    %v439 = vadd.f32 %v311, %v388
    %v440 = vadd.f32 %v312, %v393
    %v441 = vadd.f32 %v313, %v393
    %v442 = vadd.f32 %v314, %v398
    %v443 = vadd.f32 %v315, %v398
    %v444 = vadd.f32 %v316, %v403
    %v445 = vadd.f32 %v317, %v403
    %v446 = vadd.f32 %v318, %v408
    %v447 = vadd.f32 %v319, %v408
    %v448 = vadd.f32 %v320, %v413
    %v449 = vadd.f32 %v321, %v413
    %v450 = vadd.f32 %v322, %v418
    %v451 = vadd.f32 %v323, %v418
    %v452 = vmax.f32 %v420, 0.0
    %v453 = vmax.f32 %v421, 0.0
    %v454 = vmax.f32 %v422, 0.0
    %v455 = vmax.f32 %v423, 0.0
    %v456 = vmax.f32 %v424, 0.0
    %v457 = vmax.f32 %v425, 0.0
    %v458 = vmax.f32 %v426, 0.0
    %v459 = vmax.f32 %v427, 0.0
    %v460 = vmax.f32 %v428, 0.0
    %v461 = vmax.f32 %v429, 0.0
    %v462 = vmax.f32 %v430, 0.0
    %v463 = vmax.f32 %v431, 0.0
    %v464 = vmax.f32 %v432, 0.0
    %v465 = vmax.f32 %v433, 0.0
    %v466 = vmax.f32 %v434, 0.0
    %v467 = vmax.f32 %v435, 0.0
    %v468 = vmax.f32 %v436, 0.0
    %v469 = vmax.f32 %v437, 0.0
    %v470 = vmax.f32 %v438, 0.0
    %v471 = vmax.f32 %v439, 0.0
    %v472 = vmax.f32 %v440, 0.0
    %v473 = vmax.f32 %v441, 0.0
    %v474 = vmax.f32 %v442, 0.0
    %v475 = vmax.f32 %v443, 0.0
    %v476 = vmax.f32 %v444, 0.0
    %v477 = vmax.f32 %v445, 0.0
    %v478 = vmax.f32 %v446, 0.0
    %v479 = vmax.f32 %v447, 0.0
    %v480 = vmax.f32 %v448, 0.0
    %v481 = vmax.f32 %v449, 0.0
    %v482 = vmax.f32 %v450, 0.0
    %v483 = vmax.f32 %v451, 0.0
    %v484 = vld [vmem:[%s4] sm:$0xff]
    %v485 = vld [vmem:[%s4 + $0x8] sm:$0xff]
    %v486 = vld [vmem:[%s4 + $0x10] sm:$0xff]
    %v487 = vld [vmem:[%s4 + $0x18] sm:$0xff]
    %v488 = vld [vmem:[%s4 + $0x20] sm:$0xff]
    %v489 = vld [vmem:[%s4 + $0x28] sm:$0xff]
    %v490 = vld [vmem:[%s4 + $0x30] sm:$0xff]
    %v491 = vld [vmem:[%s4 + $0x38] sm:$0xff]
    %v492 = vld [vmem:[%s4 + $0x40] sm:$0xff]
    %v493 = vld [vmem:[%s4 + $0x48] sm:$0xff]
    %v494 = vld [vmem:[%s4 + $0x50] sm:$0xff]
    %v495 = vld [vmem:[%s4 + $0x58] sm:$0xff]
    %v496 = vld [vmem:[%s4 + $0x60] sm:$0xff]
    %v497 = vld [vmem:[%s4 + $0x68] sm:$0xff]
    %v498 = vld [vmem:[%s4 + $0x70] sm:$0xff]
    %v499 = vld [vmem:[%s4 + $0x78] sm:$0xff]
    %v500 = vld [vmem:[%s5] sm:$0xff]
    %v501 = vld [vmem:[%s5 + $0x8] sm:$0xff]
    %v502 = vld [vmem:[%s5 + $0x10] sm:$0xff]
    %v503 = vld [vmem:[%s5 + $0x18] sm:$0xff]
    %v504 = vld [vmem:[%s5 + $0x20] sm:$0xff]
    %v505 = vld [vmem:[%s5 + $0x28] sm:$0xff]
    %v506 = vld [vmem:[%s5 + $0x30] sm:$0xff]
    %v507 = vld [vmem:[%s5 + $0x38] sm:$0xff]
    %v508 = vld [vmem:[%s5 + $0x40] sm:$0xff]
    %v509 = vld [vmem:[%s5 + $0x48] sm:$0xff]
    %v510 = vld [vmem:[%s5 + $0x50] sm:$0xff]
    %v511 = vld [vmem:[%s5 + $0x58] sm:$0xff]
    %v512 = vld [vmem:[%s5 + $0x60] sm:$0xff]
    %v513 = vld [vmem:[%s5 + $0x68] sm:$0xff]
    %v514 = vld [vmem:[%s5 + $0x70] sm:$0xff]
    %v515 = vld [vmem:[%s5 + $0x78] sm:$0xff]
    %517 = vset.pattern.permute.xlu0 0
    %518 = vperm.xlu0 %517, %v500
    %v519 = vpop.permute.xlu0 %518
    %522 = vset.pattern.permute.xlu0 0
    %523 = vperm.xlu0 %522, %v501
    %v524 = vpop.permute.xlu0 %523
    %527 = vset.pattern.permute.xlu0 0
    %528 = vperm.xlu0 %527, %v502
    %v529 = vpop.permute.xlu0 %528
    %532 = vset.pattern.permute.xlu0 0
    %533 = vperm.xlu0 %532, %v503
    %v534 = vpop.permute.xlu0 %533
    %537 = vset.pattern.permute.xlu0 0
    %538 = vperm.xlu0 %537, %v504
    %v539 = vpop.permute.xlu0 %538
    %542 = vset.pattern.permute.xlu0 0
    %543 = vperm.xlu0 %542, %v505
    %v544 = vpop.permute.xlu0 %543
    %547 = vset.pattern.permute.xlu0 0
    %548 = vperm.xlu0 %547, %v506
    %v549 = vpop.permute.xlu0 %548
    %552 = vset.pattern.permute.xlu0 0
    %553 = vperm.xlu0 %552, %v507
    %v554 = vpop.permute.xlu0 %553
    %557 = vset.pattern.permute.xlu0 0
    %558 = vperm.xlu0 %557, %v508
    %v559 = vpop.permute.xlu0 %558
    %562 = vset.pattern.permute.xlu0 0
    %563 = vperm.xlu0 %562, %v509
    %v564 = vpop.permute.xlu0 %563
    %567 = vset.pattern.permute.xlu0 0
    %568 = vperm.xlu0 %567, %v510
    %v569 = vpop.permute.xlu0 %568
    %572 = vset.pattern.permute.xlu0 0
    %573 = vperm.xlu0 %572, %v511
    %v574 = vpop.permute.xlu0 %573
    %577 = vset.pattern.permute.xlu0 0
    %578 = vperm.xlu0 %577, %v512
    %v579 = vpop.permute.xlu0 %578
    %582 = vset.pattern.permute.xlu0 0
    %583 = vperm.xlu0 %582, %v513
    %v584 = vpop.permute.xlu0 %583
    %587 = vset.pattern.permute.xlu0 0
    %588 = vperm.xlu0 %587, %v514
    %v589 = vpop.permute.xlu0 %588
    %592 = vset.pattern.permute.xlu0 0
    %593 = vperm.xlu0 %592, %v515
    %v594 = vpop.permute.xlu0 %593
    %596 = vmatprep.subr.mxu0 %v453
    %597 = vmatpush1.msra.mxu0 %v452
    %598 = vmatprep.subr.mxu0 %v455
    %599 = vmatpush1.msra.mxu0 %v454
    %600 = vmatprep.subr.mxu0 %v457
    %601 = vmatpush1.msra.mxu0 %v456
    %602 = vmatprep.subr.mxu0 %v459
    %603 = vmatpush1.msra.mxu0 %v458
    %604 = vmatprep.subr.mxu0 %v461
    %605 = vmatpush1.msra.mxu0 %v460
    %606 = vmatprep.subr.mxu0 %v463
    %607 = vmatpush1.msra.mxu0 %v462
    %608 = vmatprep.subr.mxu0 %v465
    %609 = vmatpush1.msra.mxu0 %v464
    %610 = vmatprep.subr.mxu0 %v467
    %611 = vmatpush1.msra.mxu0 %v466
    %612 = vmatprep.subr.mxu0 %v469
    %613 = vmatpush1.msra.mxu0 %v468
    %614 = vmatprep.subr.mxu0 %v471
    %615 = vmatpush1.msra.mxu0 %v470
    %616 = vmatprep.subr.mxu0 %v473
    %617 = vmatpush1.msra.mxu0 %v472
    %618 = vmatprep.subr.mxu0 %v475
    %619 = vmatpush1.msra.mxu0 %v474
    %620 = vmatprep.subr.mxu0 %v477
    %621 = vmatpush1.msra.mxu0 %v476
    %622 = vmatprep.subr.mxu0 %v479
    %623 = vmatpush1.msra.mxu0 %v478
    %624 = vmatprep.subr.mxu0 %v481
    %625 = vmatpush1.msra.mxu0 %v480
    %626 = vmatprep.subr.mxu0 %v483
    %627 = vmatpush1.msra.mxu0 %v482
    %628 = vmatprep.subr.mxu0 0.0
    %629 = vmatpush1.msra.mxu0 0.0
    %630 = vmatprep.subr.mxu0 0.0
    %631 = vmatpush1.msra.mxu0 0.0
    %632 = vmatprep.subr.mxu0 0.0
    %633 = vmatpush1.msra.mxu0 0.0
    %634 = vmatprep.subr.mxu0 0.0
    %635 = vmatpush1.msra.mxu0 0.0
    %636 = vmatprep.subr.mxu0 0.0
    %637 = vmatpush1.msra.mxu0 0.0
    %638 = vmatprep.subr.mxu0 0.0
    %639 = vmatpush1.msra.mxu0 0.0
    %640 = vmatprep.subr.mxu0 0.0
    %641 = vmatpush1.msra.mxu0 0.0
    %642 = vmatprep.subr.mxu0 0.0
    %643 = vmatpush1.msra.mxu0 0.0
    %644 = vmatprep.subr.mxu0 0.0
    %645 = vmatpush1.msra.mxu0 0.0
    %646 = vmatprep.subr.mxu0 0.0
    %647 = vmatpush1.msra.mxu0 0.0
    %648 = vmatprep.subr.mxu0 0.0
    %649 = vmatpush1.msra.mxu0 0.0
    %650 = vmatprep.subr.mxu0 0.0
    %651 = vmatpush1.msra.mxu0 0.0
    %652 = vmatprep.subr.mxu0 0.0
    %653 = vmatpush1.msra.mxu0 0.0
    %654 = vmatprep.subr.mxu0 0.0
    %655 = vmatpush1.msra.mxu0 0.0
    %656 = vmatprep.subr.mxu0 0.0
    %657 = vmatpush1.msra.mxu0 0.0
    %658 = vmatprep.subr.mxu0 0.0
    %659 = vmatpush1.msra.mxu0 0.0
    %660 = vmatprep.mubr.f32.mxu0 0.0
    %661 = vmatmul.mubr.f32.gmra.mrb[0].mxu0 %v484
    %v662 = vpop.f32.mrb[0].mxu0
    %v663 = vadd.f32 %v519, %v662
    %v664 = vpop.f32.mrb[0].mxu0
    %v665 = vadd.f32 %v519, %v664
    %666 = vmatprep.mubr.f32.mxu0 0.0
    %667 = vmatmul.mubr.f32.gmra.mrb[0].mxu0 %v485
    %v668 = vpop.f32.mrb[0].mxu0
    %v669 = vadd.f32 %v524, %v668
    %v670 = vpop.f32.mrb[0].mxu0
    %v671 = vadd.f32 %v524, %v670
    %672 = vmatprep.mubr.f32.mxu0 0.0
    %673 = vmatmul.mubr.f32.gmra.mrb[0].mxu0 %v486
    %v674 = vpop.f32.mrb[0].mxu0
    %v675 = vadd.f32 %v529, %v674
    %v676 = vpop.f32.mrb[0].mxu0
    %v677 = vadd.f32 %v529, %v676
    %678 = vmatprep.mubr.f32.mxu0 0.0
    %679 = vmatmul.mubr.f32.gmra.mrb[0].mxu0 %v487
    %v680 = vpop.f32.mrb[0].mxu0
    %v681 = vadd.f32 %v534, %v680
    %v682 = vpop.f32.mrb[0].mxu0
    %v683 = vadd.f32 %v534, %v682
    %684 = vmatprep.mubr.f32.mxu0 0.0
    %685 = vmatmul.mubr.f32.gmra.mrb[0].mxu0 %v488
    %v686 = vpop.f32.mrb[0].mxu0
    %v687 = vadd.f32 %v539, %v686
    %v688 = vpop.f32.mrb[0].mxu0
    %v689 = vadd.f32 %v539, %v688
    %690 = vmatprep.mubr.f32.mxu0 0.0
    %691 = vmatmul.mubr.f32.gmra.mrb[0].mxu0 %v489
    %v692 = vpop.f32.mrb[0].mxu0
    %v693 = vadd.f32 %v544, %v692
    %v694 = vpop.f32.mrb[0].mxu0
    %v695 = vadd.f32 %v544, %v694
    %696 = vmatprep.mubr.f32.mxu0 0.0
    %697 = vmatmul.mubr.f32.gmra.mrb[0].mxu0 %v490
    %v698 = vpop.f32.mrb[0].mxu0
    %v699 = vadd.f32 %v549, %v698
    %v700 = vpop.f32.mrb[0].mxu0
    %v701 = vadd.f32 %v549, %v700
    %702 = vmatprep.mubr.f32.mxu0 0.0
    %703 = vmatmul.mubr.f32.gmra.mrb[0].mxu0 %v491
    %v704 = vpop.f32.mrb[0].mxu0
    %v705 = vadd.f32 %v554, %v704
    %v706 = vpop.f32.mrb[0].mxu0
    %v707 = vadd.f32 %v554, %v706
    %708 = vmatprep.mubr.f32.mxu0 0.0
    %709 = vmatmul.mubr.f32.gmra.mrb[0].mxu0 %v492
    %v710 = vpop.f32.mrb[0].mxu0
    %v711 = vadd.f32 %v559, %v710
    %v712 = vpop.f32.mrb[0].mxu0
    %v713 = vadd.f32 %v559, %v712
    %714 = vmatprep.mubr.f32.mxu0 0.0
    %715 = vmatmul.mubr.f32.gmra.mrb[0].mxu0 %v493
    %v716 = vpop.f32.mrb[0].mxu0
    %v717 = vadd.f32 %v564, %v716
    %v718 = vpop.f32.mrb[0].mxu0
    %v719 = vadd.f32 %v564, %v718
    %720 = vmatprep.mubr.f32.mxu0 0.0
    %721 = vmatmul.mubr.f32.gmra.mrb[0].mxu0 %v494
    %v722 = vpop.f32.mrb[0].mxu0
    %v723 = vadd.f32 %v569, %v722
    %v724 = vpop.f32.mrb[0].mxu0
    %v725 = vadd.f32 %v569, %v724
    %726 = vmatprep.mubr.f32.mxu0 0.0
    %727 = vmatmul.mubr.f32.gmra.mrb[0].mxu0 %v495
    %v728 = vpop.f32.mrb[0].mxu0
    %v729 = vadd.f32 %v574, %v728
    %v730 = vpop.f32.mrb[0].mxu0
    %v731 = vadd.f32 %v574, %v730
    %732 = vmatprep.mubr.f32.mxu0 0.0
    %733 = vmatmul.mubr.f32.gmra.mrb[0].mxu0 %v496
    %v734 = vpop.f32.mrb[0].mxu0
    %v735 = vadd.f32 %v579, %v734
    %v736 = vpop.f32.mrb[0].mxu0
    %v737 = vadd.f32 %v579, %v736
    %738 = vmatprep.mubr.f32.mxu0 0.0
    %739 = vmatmul.mubr.f32.gmra.mrb[0].mxu0 %v497
    %v740 = vpop.f32.mrb[0].mxu0
    %v741 = vadd.f32 %v584, %v740
    %v742 = vpop.f32.mrb[0].mxu0
    %v743 = vadd.f32 %v584, %v742
    %744 = vmatprep.mubr.f32.mxu0 0.0
    %745 = vmatmul.mubr.f32.gmra.mrb[0].mxu0 %v498
    %v746 = vpop.f32.mrb[0].mxu0
    %v747 = vadd.f32 %v589, %v746
    %v748 = vpop.f32.mrb[0].mxu0
    %v749 = vadd.f32 %v589, %v748
    %750 = vmatprep.mubr.f32.mxu0 0.0
    %751 = vmatmul.mubr.f32.gmra.mrb[0].mxu0 %v499
    %v752 = vpop.f32.mrb[0].mxu0
    %v753 = vadd.f32 %v594, %v752
    %v754 = vpop.f32.mrb[0].mxu0
    %v755 = vadd.f32 %v594, %v754
    %756 = vdwg.mxu0
    %v757 = vmax.f32 %v663, 0.0
    %v758 = vmax.f32 %v665, 0.0
    %v759 = vmax.f32 %v669, 0.0
    %v760 = vmax.f32 %v671, 0.0
    %v761 = vmax.f32 %v675, 0.0
    %v762 = vmax.f32 %v677, 0.0
    %v763 = vmax.f32 %v681, 0.0
    %v764 = vmax.f32 %v683, 0.0
    %v765 = vmax.f32 %v687, 0.0
    %v766 = vmax.f32 %v689, 0.0
    %v767 = vmax.f32 %v693, 0.0
    %v768 = vmax.f32 %v695, 0.0
    %v769 = vmax.f32 %v699, 0.0
    %v770 = vmax.f32 %v701, 0.0
    %v771 = vmax.f32 %v705, 0.0
    %v772 = vmax.f32 %v707, 0.0
    %v773 = vmax.f32 %v711, 0.0
    %v774 = vmax.f32 %v713, 0.0
    %v775 = vmax.f32 %v717, 0.0
    %v776 = vmax.f32 %v719, 0.0
    %v777 = vmax.f32 %v723, 0.0
    %v778 = vmax.f32 %v725, 0.0
    %v779 = vmax.f32 %v729, 0.0
    %v780 = vmax.f32 %v731, 0.0
    %v781 = vmax.f32 %v735, 0.0
    %v782 = vmax.f32 %v737, 0.0
    %v783 = vmax.f32 %v741, 0.0
    %v784 = vmax.f32 %v743, 0.0
    %v785 = vmax.f32 %v747, 0.0
    %v786 = vmax.f32 %v749, 0.0
    %v787 = vmax.f32 %v753, 0.0
    %v788 = vmax.f32 %v755, 0.0
    %s789 = scalar_lea.vmem %s4, 128
    %v790 = vld [vmem:[%s789] sm:$0xff]
    %v791 = vld [vmem:[%s789 + $0x8] sm:$0xff]
    %v792 = vld [vmem:[%s789 + $0x10] sm:$0xff]
    %v793 = vld [vmem:[%s789 + $0x18] sm:$0xff]
    %v794 = vld [vmem:[%s789 + $0x20] sm:$0xff]
    %v795 = vld [vmem:[%s789 + $0x28] sm:$0xff]
    %v796 = vld [vmem:[%s789 + $0x30] sm:$0xff]
    %v797 = vld [vmem:[%s789 + $0x38] sm:$0xff]
    %v798 = vld [vmem:[%s789 + $0x40] sm:$0xff]
    %v799 = vld [vmem:[%s789 + $0x48] sm:$0xff]
    %v800 = vld [vmem:[%s789 + $0x50] sm:$0xff]
    %v801 = vld [vmem:[%s789 + $0x58] sm:$0xff]
    %v802 = vld [vmem:[%s789 + $0x60] sm:$0xff]
    %v803 = vld [vmem:[%s789 + $0x68] sm:$0xff]
    %v804 = vld [vmem:[%s789 + $0x70] sm:$0xff]
    %v805 = vld [vmem:[%s789 + $0x78] sm:$0xff]
    %s806 = scalar_lea.vmem %s5, 128
    %v807 = vld [vmem:[%s806] sm:$0xff]
    %v808 = vld [vmem:[%s806 + $0x8] sm:$0xff]
    %v809 = vld [vmem:[%s806 + $0x10] sm:$0xff]
    %v810 = vld [vmem:[%s806 + $0x18] sm:$0xff]
    %v811 = vld [vmem:[%s806 + $0x20] sm:$0xff]
    %v812 = vld [vmem:[%s806 + $0x28] sm:$0xff]
    %v813 = vld [vmem:[%s806 + $0x30] sm:$0xff]
    %v814 = vld [vmem:[%s806 + $0x38] sm:$0xff]
    %v815 = vld [vmem:[%s806 + $0x40] sm:$0xff]
    %v816 = vld [vmem:[%s806 + $0x48] sm:$0xff]
    %v817 = vld [vmem:[%s806 + $0x50] sm:$0xff]
    %v818 = vld [vmem:[%s806 + $0x58] sm:$0xff]
    %v819 = vld [vmem:[%s806 + $0x60] sm:$0xff]
    %v820 = vld [vmem:[%s806 + $0x68] sm:$0xff]
    %v821 = vld [vmem:[%s806 + $0x70] sm:$0xff]
    %v822 = vld [vmem:[%s806 + $0x78] sm:$0xff]
    %824 = vset.pattern.permute.xlu0 0
    %825 = vperm.xlu0 %824, %v807
    %v826 = vpop.permute.xlu0 %825
    %829 = vset.pattern.permute.xlu0 0
    %830 = vperm.xlu0 %829, %v808
    %v831 = vpop.permute.xlu0 %830
    %834 = vset.pattern.permute.xlu0 0
    %835 = vperm.xlu0 %834, %v809
    %v836 = vpop.permute.xlu0 %835
    %839 = vset.pattern.permute.xlu0 0
    %840 = vperm.xlu0 %839, %v810
    %v841 = vpop.permute.xlu0 %840
    %844 = vset.pattern.permute.xlu0 0
    %845 = vperm.xlu0 %844, %v811
    %v846 = vpop.permute.xlu0 %845
    %849 = vset.pattern.permute.xlu0 0
    %850 = vperm.xlu0 %849, %v812
    %v851 = vpop.permute.xlu0 %850
    %854 = vset.pattern.permute.xlu0 0
    %855 = vperm.xlu0 %854, %v813
    %v856 = vpop.permute.xlu0 %855
    %859 = vset.pattern.permute.xlu0 0
    %860 = vperm.xlu0 %859, %v814
    %v861 = vpop.permute.xlu0 %860
    %864 = vset.pattern.permute.xlu0 0
    %865 = vperm.xlu0 %864, %v815
    %v866 = vpop.permute.xlu0 %865
    %869 = vset.pattern.permute.xlu0 0
    %870 = vperm.xlu0 %869, %v816
    %v871 = vpop.permute.xlu0 %870
    %874 = vset.pattern.permute.xlu0 0
    %875 = vperm.xlu0 %874, %v817
    %v876 = vpop.permute.xlu0 %875
    %879 = vset.pattern.permute.xlu0 0
    %880 = vperm.xlu0 %879, %v818
    %v881 = vpop.permute.xlu0 %880
    %884 = vset.pattern.permute.xlu0 0
    %885 = vperm.xlu0 %884, %v819
    %v886 = vpop.permute.xlu0 %885
    %889 = vset.pattern.permute.xlu0 0
    %890 = vperm.xlu0 %889, %v820
    %v891 = vpop.permute.xlu0 %890
    %894 = vset.pattern.permute.xlu0 0
    %895 = vperm.xlu0 %894, %v821
    %v896 = vpop.permute.xlu0 %895
    %899 = vset.pattern.permute.xlu0 0
    %900 = vperm.xlu0 %899, %v822
    %v901 = vpop.permute.xlu0 %900
    %903 = vmatprep.subr.mxu0 %v758
    %904 = vmatpush1.msra.mxu0 %v757
    %905 = vmatprep.subr.mxu0 %v760
    %906 = vmatpush1.msra.mxu0 %v759
    %907 = vmatprep.subr.mxu0 %v762
    %908 = vmatpush1.msra.mxu0 %v761
    %909 = vmatprep.subr.mxu0 %v764
    %910 = vmatpush1.msra.mxu0 %v763
    %911 = vmatprep.subr.mxu0 %v766
    %912 = vmatpush1.msra.mxu0 %v765
    %913 = vmatprep.subr.mxu0 %v768
    %914 = vmatpush1.msra.mxu0 %v767
    %915 = vmatprep.subr.mxu0 %v770
    %916 = vmatpush1.msra.mxu0 %v769
    %917 = vmatprep.subr.mxu0 %v772
    %918 = vmatpush1.msra.mxu0 %v771
    %919 = vmatprep.subr.mxu0 %v774
    %920 = vmatpush1.msra.mxu0 %v773
    %921 = vmatprep.subr.mxu0 %v776
    %922 = vmatpush1.msra.mxu0 %v775
    %923 = vmatprep.subr.mxu0 %v778
    %924 = vmatpush1.msra.mxu0 %v777
    %925 = vmatprep.subr.mxu0 %v780
    %926 = vmatpush1.msra.mxu0 %v779
    %927 = vmatprep.subr.mxu0 %v782
    %928 = vmatpush1.msra.mxu0 %v781
    %929 = vmatprep.subr.mxu0 %v784
    %930 = vmatpush1.msra.mxu0 %v783
    %931 = vmatprep.subr.mxu0 %v786
    %932 = vmatpush1.msra.mxu0 %v785
    %933 = vmatprep.subr.mxu0 %v788
    %934 = vmatpush1.msra.mxu0 %v787
    %935 = vmatprep.subr.mxu0 0.0
    %936 = vmatpush1.msra.mxu0 0.0
    %937 = vmatprep.subr.mxu0 0.0
    %938 = vmatpush1.msra.mxu0 0.0
    %939 = vmatprep.subr.mxu0 0.0
    %940 = vmatpush1.msra.mxu0 0.0
    %941 = vmatprep.subr.mxu0 0.0
    %942 = vmatpush1.msra.mxu0 0.0
    %943 = vmatprep.subr.mxu0 0.0
    %944 = vmatpush1.msra.mxu0 0.0
    %945 = vmatprep.subr.mxu0 0.0
    %946 = vmatpush1.msra.mxu0 0.0
    %947 = vmatprep.subr.mxu0 0.0
    %948 = vmatpush1.msra.mxu0 0.0
    %949 = vmatprep.subr.mxu0 0.0
    %950 = vmatpush1.msra.mxu0 0.0
    %951 = vmatprep.subr.mxu0 0.0
    %952 = vmatpush1.msra.mxu0 0.0
    %953 = vmatprep.subr.mxu0 0.0
    %954 = vmatpush1.msra.mxu0 0.0
    %955 = vmatprep.subr.mxu0 0.0
    %956 = vmatpush1.msra.mxu0 0.0
    %957 = vmatprep.subr.mxu0 0.0
    %958 = vmatpush1.msra.mxu0 0.0
    %959 = vmatprep.subr.mxu0 0.0
    %960 = vmatpush1.msra.mxu0 0.0
    %961 = vmatprep.subr.mxu0 0.0
    %962 = vmatpush1.msra.mxu0 0.0
    %963 = vmatprep.subr.mxu0 0.0
    %964 = vmatpush1.msra.mxu0 0.0
    %965 = vmatprep.subr.mxu0 0.0
    %966 = vmatpush1.msra.mxu0 0.0
    %967 = vmatprep.mubr.f32.mxu0 0.0
    %968 = vmatmul.mubr.f32.gmra.mrb[0].mxu0 %v790
    %v969 = vpop.f32.mrb[0].mxu0
    %v970 = vadd.f32 %v826, %v969
    %v971 = vpop.f32.mrb[0].mxu0
    %v972 = vadd.f32 %v826, %v971
    %973 = vmatprep.mubr.f32.mxu0 0.0
    %974 = vmatmul.mubr.f32.gmra.mrb[0].mxu0 %v791
    %v975 = vpop.f32.mrb[0].mxu0
    %v976 = vadd.f32 %v831, %v975
    %v977 = vpop.f32.mrb[0].mxu0
    %v978 = vadd.f32 %v831, %v977
    %979 = vmatprep.mubr.f32.mxu0 0.0
    %980 = vmatmul.mubr.f32.gmra.mrb[0].mxu0 %v792
    %v981 = vpop.f32.mrb[0].mxu0
    %v982 = vadd.f32 %v836, %v981
    %v983 = vpop.f32.mrb[0].mxu0
    %v984 = vadd.f32 %v836, %v983
    %985 = vmatprep.mubr.f32.mxu0 0.0
    %986 = vmatmul.mubr.f32.gmra.mrb[0].mxu0 %v793
    %v987 = vpop.f32.mrb[0].mxu0
    %v988 = vadd.f32 %v841, %v987
    %v989 = vpop.f32.mrb[0].mxu0
    %v990 = vadd.f32 %v841, %v989
    %991 = vmatprep.mubr.f32.mxu0 0.0
    %992 = vmatmul.mubr.f32.gmra.mrb[0].mxu0 %v794
    %v993 = vpop.f32.mrb[0].mxu0
    %v994 = vadd.f32 %v846, %v993
    %v995 = vpop.f32.mrb[0].mxu0
    %v996 = vadd.f32 %v846, %v995
    %997 = vmatprep.mubr.f32.mxu0 0.0
    %998 = vmatmul.mubr.f32.gmra.mrb[0].mxu0 %v795
    %v999 = vpop.f32.mrb[0].mxu0
    %v1000 = vadd.f32 %v851, %v999
    %v1001 = vpop.f32.mrb[0].mxu0
    %v1002 = vadd.f32 %v851, %v1001
    %1003 = vmatprep.mubr.f32.mxu0 0.0
    %1004 = vmatmul.mubr.f32.gmra.mrb[0].mxu0 %v796
    %v1005 = vpop.f32.mrb[0].mxu0
    %v1006 = vadd.f32 %v856, %v1005
    %v1007 = vpop.f32.mrb[0].mxu0
    %v1008 = vadd.f32 %v856, %v1007
    %1009 = vmatprep.mubr.f32.mxu0 0.0
    %1010 = vmatmul.mubr.f32.gmra.mrb[0].mxu0 %v797
    %v1011 = vpop.f32.mrb[0].mxu0
    %v1012 = vadd.f32 %v861, %v1011
    %v1013 = vpop.f32.mrb[0].mxu0
    %v1014 = vadd.f32 %v861, %v1013
    %1015 = vmatprep.mubr.f32.mxu0 0.0
    %1016 = vmatmul.mubr.f32.gmra.mrb[0].mxu0 %v798
    %v1017 = vpop.f32.mrb[0].mxu0
    %v1018 = vadd.f32 %v866, %v1017
    %v1019 = vpop.f32.mrb[0].mxu0
    %v1020 = vadd.f32 %v866, %v1019
    %1021 = vmatprep.mubr.f32.mxu0 0.0
    %1022 = vmatmul.mubr.f32.gmra.mrb[0].mxu0 %v799
    %v1023 = vpop.f32.mrb[0].mxu0
    %v1024 = vadd.f32 %v871, %v1023
    %v1025 = vpop.f32.mrb[0].mxu0
    %v1026 = vadd.f32 %v871, %v1025
    %1027 = vmatprep.mubr.f32.mxu0 0.0
    %1028 = vmatmul.mubr.f32.gmra.mrb[0].mxu0 %v800
    %v1029 = vpop.f32.mrb[0].mxu0
    %v1030 = vadd.f32 %v876, %v1029
    %v1031 = vpop.f32.mrb[0].mxu0
    %v1032 = vadd.f32 %v876, %v1031
    %1033 = vmatprep.mubr.f32.mxu0 0.0
    %1034 = vmatmul.mubr.f32.gmra.mrb[0].mxu0 %v801
    %v1035 = vpop.f32.mrb[0].mxu0
    %v1036 = vadd.f32 %v881, %v1035
    %v1037 = vpop.f32.mrb[0].mxu0
    %v1038 = vadd.f32 %v881, %v1037
    %1039 = vmatprep.mubr.f32.mxu0 0.0
    %1040 = vmatmul.mubr.f32.gmra.mrb[0].mxu0 %v802
    %v1041 = vpop.f32.mrb[0].mxu0
    %v1042 = vadd.f32 %v886, %v1041
    %v1043 = vpop.f32.mrb[0].mxu0
    %v1044 = vadd.f32 %v886, %v1043
    %1045 = vmatprep.mubr.f32.mxu0 0.0
    %1046 = vmatmul.mubr.f32.gmra.mrb[0].mxu0 %v803
    %v1047 = vpop.f32.mrb[0].mxu0
    %v1048 = vadd.f32 %v891, %v1047
    %v1049 = vpop.f32.mrb[0].mxu0
    %v1050 = vadd.f32 %v891, %v1049
    %1051 = vmatprep.mubr.f32.mxu0 0.0
    %1052 = vmatmul.mubr.f32.gmra.mrb[0].mxu0 %v804
    %v1053 = vpop.f32.mrb[0].mxu0
    %v1054 = vadd.f32 %v896, %v1053
    %v1055 = vpop.f32.mrb[0].mxu0
    %v1056 = vadd.f32 %v896, %v1055
    %1057 = vmatprep.mubr.f32.mxu0 0.0
    %1058 = vmatmul.mubr.f32.gmra.mrb[0].mxu0 %v805
    %v1059 = vpop.f32.mrb[0].mxu0
    %v1060 = vadd.f32 %v901, %v1059
    %v1061 = vpop.f32.mrb[0].mxu0
    %v1062 = vadd.f32 %v901, %v1061
    %1063 = vdwg.mxu0
    %v1064 = vmax.f32 %v970, 0.0
    %v1065 = vmax.f32 %v972, 0.0
    %v1066 = vmax.f32 %v976, 0.0
    %v1067 = vmax.f32 %v978, 0.0
    %v1068 = vmax.f32 %v982, 0.0
    %v1069 = vmax.f32 %v984, 0.0
    %v1070 = vmax.f32 %v988, 0.0
    %v1071 = vmax.f32 %v990, 0.0
    %v1072 = vmax.f32 %v994, 0.0
    %v1073 = vmax.f32 %v996, 0.0
    %v1074 = vmax.f32 %v1000, 0.0
    %v1075 = vmax.f32 %v1002, 0.0
    %v1076 = vmax.f32 %v1006, 0.0
    %v1077 = vmax.f32 %v1008, 0.0
    %v1078 = vmax.f32 %v1012, 0.0
    %v1079 = vmax.f32 %v1014, 0.0
    %v1080 = vmax.f32 %v1018, 0.0
    %v1081 = vmax.f32 %v1020, 0.0
    %v1082 = vmax.f32 %v1024, 0.0
    %v1083 = vmax.f32 %v1026, 0.0
    %v1084 = vmax.f32 %v1030, 0.0
    %v1085 = vmax.f32 %v1032, 0.0
    %v1086 = vmax.f32 %v1036, 0.0
    %v1087 = vmax.f32 %v1038, 0.0
    %v1088 = vmax.f32 %v1042, 0.0
    %v1089 = vmax.f32 %v1044, 0.0
    %v1090 = vmax.f32 %v1048, 0.0
    %v1091 = vmax.f32 %v1050, 0.0
    %v1092 = vmax.f32 %v1054, 0.0
    %v1093 = vmax.f32 %v1056, 0.0
    %v1094 = vmax.f32 %v1060, 0.0
    %v1095 = vmax.f32 %v1062, 0.0
    %v1096 = vld [vmem:[%s6] sm:$0xff]
    %v1097 = vld [vmem:[%s6 + $0x8] sm:$0xff]
    %v1098 = vld [vmem:[%s6 + $0x10] sm:$0xff]
    %v1099 = vld [vmem:[%s6 + $0x18] sm:$0xff]
    %v1100 = vld [vmem:[%s6 + $0x20] sm:$0xff]
    %v1101 = vld [vmem:[%s6 + $0x28] sm:$0xff]
    %v1102 = vld [vmem:[%s6 + $0x30] sm:$0xff]
    %v1103 = vld [vmem:[%s6 + $0x38] sm:$0xff]
    %v1104 = vld [vmem:[%s6 + $0x40] sm:$0xff]
    %v1105 = vld [vmem:[%s6 + $0x48] sm:$0xff]
    %v1106 = vld [vmem:[%s6 + $0x50] sm:$0xff]
    %v1107 = vld [vmem:[%s6 + $0x58] sm:$0xff]
    %v1108 = vld [vmem:[%s6 + $0x60] sm:$0xff]
    %v1109 = vld [vmem:[%s6 + $0x68] sm:$0xff]
    %v1110 = vld [vmem:[%s6 + $0x70] sm:$0xff]
    %v1111 = vld [vmem:[%s6 + $0x78] sm:$0xff]
    %1113 = vset.pattern.permute.xlu0 0
    %1114 = vperm.xlu0 %1113, %v1096
    %v1115 = vpop.permute.xlu0 %1114
    %1118 = vset.pattern.permute.xlu0 0
    %1119 = vperm.xlu0 %1118, %v1097
    %v1120 = vpop.permute.xlu0 %1119
    %1123 = vset.pattern.permute.xlu0 0
    %1124 = vperm.xlu0 %1123, %v1098
    %v1125 = vpop.permute.xlu0 %1124
    %1128 = vset.pattern.permute.xlu0 0
    %1129 = vperm.xlu0 %1128, %v1099
    %v1130 = vpop.permute.xlu0 %1129
    %1133 = vset.pattern.permute.xlu0 0
    %1134 = vperm.xlu0 %1133, %v1100
    %v1135 = vpop.permute.xlu0 %1134
    %1138 = vset.pattern.permute.xlu0 0
    %1139 = vperm.xlu0 %1138, %v1101
    %v1140 = vpop.permute.xlu0 %1139
    %1143 = vset.pattern.permute.xlu0 0
    %1144 = vperm.xlu0 %1143, %v1102
    %v1145 = vpop.permute.xlu0 %1144
    %1148 = vset.pattern.permute.xlu0 0
    %1149 = vperm.xlu0 %1148, %v1103
    %v1150 = vpop.permute.xlu0 %1149
    %1153 = vset.pattern.permute.xlu0 0
    %1154 = vperm.xlu0 %1153, %v1104
    %v1155 = vpop.permute.xlu0 %1154
    %1158 = vset.pattern.permute.xlu0 0
    %1159 = vperm.xlu0 %1158, %v1105
    %v1160 = vpop.permute.xlu0 %1159
    %1163 = vset.pattern.permute.xlu0 0
    %1164 = vperm.xlu0 %1163, %v1106
    %v1165 = vpop.permute.xlu0 %1164
    %1168 = vset.pattern.permute.xlu0 0
    %1169 = vperm.xlu0 %1168, %v1107
    %v1170 = vpop.permute.xlu0 %1169
    %1173 = vset.pattern.permute.xlu0 0
    %1174 = vperm.xlu0 %1173, %v1108
    %v1175 = vpop.permute.xlu0 %1174
    %1178 = vset.pattern.permute.xlu0 0
    %1179 = vperm.xlu0 %1178, %v1109
    %v1180 = vpop.permute.xlu0 %1179
    %1183 = vset.pattern.permute.xlu0 0
    %1184 = vperm.xlu0 %1183, %v1110
    %v1185 = vpop.permute.xlu0 %1184
    %1188 = vset.pattern.permute.xlu0 0
    %1189 = vperm.xlu0 %1188, %v1111
    %v1190 = vpop.permute.xlu0 %1189
    %v1192 = vmul.f32 %v1115, %v1064
    %v1193 = vmul.f32 %v1115, %v1065
    %v1194 = vmul.f32 %v1120, %v1066
    %v1195 = vmul.f32 %v1120, %v1067
    %v1196 = vmul.f32 %v1125, %v1068
    %v1197 = vmul.f32 %v1125, %v1069
    %v1198 = vmul.f32 %v1130, %v1070
    %v1199 = vmul.f32 %v1130, %v1071
    %v1200 = vmul.f32 %v1135, %v1072
    %v1201 = vmul.f32 %v1135, %v1073
    %v1202 = vmul.f32 %v1140, %v1074
    %v1203 = vmul.f32 %v1140, %v1075
    %v1204 = vmul.f32 %v1145, %v1076
    %v1205 = vmul.f32 %v1145, %v1077
    %v1206 = vmul.f32 %v1150, %v1078
    %v1207 = vmul.f32 %v1150, %v1079
    %v1208 = vmul.f32 %v1155, %v1080
    %v1209 = vmul.f32 %v1155, %v1081
    %v1210 = vmul.f32 %v1160, %v1082
    %v1211 = vmul.f32 %v1160, %v1083
    %v1212 = vmul.f32 %v1165, %v1084
    %v1213 = vmul.f32 %v1165, %v1085
    %v1214 = vmul.f32 %v1170, %v1086
    %v1215 = vmul.f32 %v1170, %v1087
    %v1216 = vmul.f32 %v1175, %v1088
    %v1217 = vmul.f32 %v1175, %v1089
    %v1218 = vmul.f32 %v1180, %v1090
    %v1219 = vmul.f32 %v1180, %v1091
    %v1220 = vmul.f32 %v1185, %v1092
    %v1221 = vmul.f32 %v1185, %v1093
    %v1222 = vmul.f32 %v1190, %v1094
    %v1223 = vmul.f32 %v1190, %v1095
    %v1224 = vadd.f32 %v1192, %v1194
    %v1225 = vadd.f32 %v1224, %v1196
    %v1226 = vadd.f32 %v1225, %v1198
    %v1227 = vadd.f32 %v1226, %v1200
    %v1228 = vadd.f32 %v1227, %v1202
    %v1229 = vadd.f32 %v1228, %v1204
    %v1230 = vadd.f32 %v1229, %v1206
    %v1231 = vadd.f32 %v1230, %v1208
    %v1232 = vadd.f32 %v1231, %v1210
    %v1233 = vadd.f32 %v1232, %v1212
    %v1234 = vadd.f32 %v1233, %v1214
    %v1235 = vadd.f32 %v1234, %v1216
    %v1236 = vadd.f32 %v1235, %v1218
    %v1237 = vadd.f32 %v1236, %v1220
    %v1238 = vadd.f32 %v1237, %v1222
    %v1239 = vrot.slane %v1238, 4
    %v1240 = vadd.f32 %v1238, %v1239
    %v1241 = vrot.slane %v1240, 2
    %v1242 = vadd.f32 %v1240, %v1241
    %v1243 = vrot.slane %v1242, 1
    %v1244 = vadd.f32 %v1242, %v1243
    %v1245 = vadd.f32 %v1193, %v1195
    %v1246 = vadd.f32 %v1245, %v1197
    %v1247 = vadd.f32 %v1246, %v1199
    %v1248 = vadd.f32 %v1247, %v1201
    %v1249 = vadd.f32 %v1248, %v1203
    %v1250 = vadd.f32 %v1249, %v1205
    %v1251 = vadd.f32 %v1250, %v1207
    %v1252 = vadd.f32 %v1251, %v1209
    %v1253 = vadd.f32 %v1252, %v1211
    %v1254 = vadd.f32 %v1253, %v1213
    %v1255 = vadd.f32 %v1254, %v1215
    %v1256 = vadd.f32 %v1255, %v1217
    %v1257 = vadd.f32 %v1256, %v1219
    %v1258 = vadd.f32 %v1257, %v1221
    %v1259 = vadd.f32 %v1258, %v1223
    %v1260 = vrot.slane %v1259, 4
    %v1261 = vadd.f32 %v1259, %v1260
    %v1262 = vrot.slane %v1261, 2
    %v1263 = vadd.f32 %v1261, %v1262
    %v1264 = vrot.slane %v1263, 1
    %v1265 = vadd.f32 %v1263, %v1264
    %v1266 = vld [vmem:[%s7] sm:$0x1]
    %1268 = vset.pattern.permute.xlu0 0
    %1269 = vperm.xlu0 %1268, %v1266
    %v1270 = vpop.permute.xlu0 %1269
    %v1272 = vlaneseq
    %v1273 = vshrl.u32 %v1272, 7
    %v1274 = vsub.s32 0, %v1273
    %v1275 = vrot.slane %v1270, %v1274
    %v1276 = vadd.f32 %v1244, %v1275
    %v1277 = vadd.f32 %v1265, %v1275
    %1278 = vset.pattern.permute.xlu0 1
    %1279 = vperm.xlu0 %1278, %v1096
    %v1280 = vpop.permute.xlu0 %1279
    %1282 = vset.pattern.permute.xlu0 1
    %1283 = vperm.xlu0 %1282, %v1097
    %v1284 = vpop.permute.xlu0 %1283
    %1286 = vset.pattern.permute.xlu0 1
    %1287 = vperm.xlu0 %1286, %v1098
    %v1288 = vpop.permute.xlu0 %1287
    %1290 = vset.pattern.permute.xlu0 1
    %1291 = vperm.xlu0 %1290, %v1099
    %v1292 = vpop.permute.xlu0 %1291
    %1294 = vset.pattern.permute.xlu0 1
    %1295 = vperm.xlu0 %1294, %v1100
    %v1296 = vpop.permute.xlu0 %1295
    %1298 = vset.pattern.permute.xlu0 1
    %1299 = vperm.xlu0 %1298, %v1101
    %v1300 = vpop.permute.xlu0 %1299
    %1302 = vset.pattern.permute.xlu0 1
    %1303 = vperm.xlu0 %1302, %v1102
    %v1304 = vpop.permute.xlu0 %1303
    %1306 = vset.pattern.permute.xlu0 1
    %1307 = vperm.xlu0 %1306, %v1103
    %v1308 = vpop.permute.xlu0 %1307
    %1310 = vset.pattern.permute.xlu0 1
    %1311 = vperm.xlu0 %1310, %v1104
    %v1312 = vpop.permute.xlu0 %1311
    %1314 = vset.pattern.permute.xlu0 1
    %1315 = vperm.xlu0 %1314, %v1105
    %v1316 = vpop.permute.xlu0 %1315
    %1318 = vset.pattern.permute.xlu0 1
    %1319 = vperm.xlu0 %1318, %v1106
    %v1320 = vpop.permute.xlu0 %1319
    %1322 = vset.pattern.permute.xlu0 1
    %1323 = vperm.xlu0 %1322, %v1107
    %v1324 = vpop.permute.xlu0 %1323
    %1326 = vset.pattern.permute.xlu0 1
    %1327 = vperm.xlu0 %1326, %v1108
    %v1328 = vpop.permute.xlu0 %1327
    %1330 = vset.pattern.permute.xlu0 1
    %1331 = vperm.xlu0 %1330, %v1109
    %v1332 = vpop.permute.xlu0 %1331
    %1334 = vset.pattern.permute.xlu0 1
    %1335 = vperm.xlu0 %1334, %v1110
    %v1336 = vpop.permute.xlu0 %1335
    %1338 = vset.pattern.permute.xlu0 1
    %1339 = vperm.xlu0 %1338, %v1111
    %v1340 = vpop.permute.xlu0 %1339
    %v1342 = vmul.f32 %v1280, %v1064
    %v1343 = vmul.f32 %v1280, %v1065
    %v1344 = vmul.f32 %v1284, %v1066
    %v1345 = vmul.f32 %v1284, %v1067
    %v1346 = vmul.f32 %v1288, %v1068
    %v1347 = vmul.f32 %v1288, %v1069
    %v1348 = vmul.f32 %v1292, %v1070
    %v1349 = vmul.f32 %v1292, %v1071
    %v1350 = vmul.f32 %v1296, %v1072
    %v1351 = vmul.f32 %v1296, %v1073
    %v1352 = vmul.f32 %v1300, %v1074
    %v1353 = vmul.f32 %v1300, %v1075
    %v1354 = vmul.f32 %v1304, %v1076
    %v1355 = vmul.f32 %v1304, %v1077
    %v1356 = vmul.f32 %v1308, %v1078
    %v1357 = vmul.f32 %v1308, %v1079
    %v1358 = vmul.f32 %v1312, %v1080
    %v1359 = vmul.f32 %v1312, %v1081
    %v1360 = vmul.f32 %v1316, %v1082
    %v1361 = vmul.f32 %v1316, %v1083
    %v1362 = vmul.f32 %v1320, %v1084
    %v1363 = vmul.f32 %v1320, %v1085
    %v1364 = vmul.f32 %v1324, %v1086
    %v1365 = vmul.f32 %v1324, %v1087
    %v1366 = vmul.f32 %v1328, %v1088
    %v1367 = vmul.f32 %v1328, %v1089
    %v1368 = vmul.f32 %v1332, %v1090
    %v1369 = vmul.f32 %v1332, %v1091
    %v1370 = vmul.f32 %v1336, %v1092
    %v1371 = vmul.f32 %v1336, %v1093
    %v1372 = vmul.f32 %v1340, %v1094
    %v1373 = vmul.f32 %v1340, %v1095
    %v1374 = vadd.f32 %v1342, %v1344
    %v1375 = vadd.f32 %v1374, %v1346
    %v1376 = vadd.f32 %v1375, %v1348
    %v1377 = vadd.f32 %v1376, %v1350
    %v1378 = vadd.f32 %v1377, %v1352
    %v1379 = vadd.f32 %v1378, %v1354
    %v1380 = vadd.f32 %v1379, %v1356
    %v1381 = vadd.f32 %v1380, %v1358
    %v1382 = vadd.f32 %v1381, %v1360
    %v1383 = vadd.f32 %v1382, %v1362
    %v1384 = vadd.f32 %v1383, %v1364
    %v1385 = vadd.f32 %v1384, %v1366
    %v1386 = vadd.f32 %v1385, %v1368
    %v1387 = vadd.f32 %v1386, %v1370
    %v1388 = vadd.f32 %v1387, %v1372
    %v1389 = vrot.slane %v1388, 4
    %v1390 = vadd.f32 %v1388, %v1389
    %v1391 = vrot.slane %v1390, 2
    %v1392 = vadd.f32 %v1390, %v1391
    %v1393 = vrot.slane %v1392, 1
    %v1394 = vadd.f32 %v1392, %v1393
    %v1395 = vadd.f32 %v1343, %v1345
    %v1396 = vadd.f32 %v1395, %v1347
    %v1397 = vadd.f32 %v1396, %v1349
    %v1398 = vadd.f32 %v1397, %v1351
    %v1399 = vadd.f32 %v1398, %v1353
    %v1400 = vadd.f32 %v1399, %v1355
    %v1401 = vadd.f32 %v1400, %v1357
    %v1402 = vadd.f32 %v1401, %v1359
    %v1403 = vadd.f32 %v1402, %v1361
    %v1404 = vadd.f32 %v1403, %v1363
    %v1405 = vadd.f32 %v1404, %v1365
    %v1406 = vadd.f32 %v1405, %v1367
    %v1407 = vadd.f32 %v1406, %v1369
    %v1408 = vadd.f32 %v1407, %v1371
    %v1409 = vadd.f32 %v1408, %v1373
    %v1410 = vrot.slane %v1409, 4
    %v1411 = vadd.f32 %v1409, %v1410
    %v1412 = vrot.slane %v1411, 2
    %v1413 = vadd.f32 %v1411, %v1412
    %v1414 = vrot.slane %v1413, 1
    %v1415 = vadd.f32 %v1413, %v1414
    %1416 = vset.pattern.permute.xlu0 1
    %1417 = vperm.xlu0 %1416, %v1266
    %v1418 = vpop.permute.xlu0 %1417
    %v1420 = vlaneseq
    %v1421 = vshrl.u32 %v1420, 7
    %v1422 = vsub.s32 0, %v1421
    %v1423 = vrot.slane %v1418, %v1422
    %v1424 = vadd.f32 %v1394, %v1423
    %v1425 = vadd.f32 %v1415, %v1423
    %v1426 = vld [vmem:[%s1] sm:$0x3]
    %v1429 = vcombine.low %v1424, %v1425
    %v1431 = vunpack.c.l.s4 1966171168
    %v1432 = vunpack.c.0.s8 %v1431
    %v1433 = vlaneseq
    %v1434 = vshrl.u32 %v1433, 7
    %v1435 = vsub.s32 %v1432, %v1434
    %v1436 = vrot.slane %v1429, %v1435
    %v1438 = vunpack.c.l.s4 1966171168
    %v1439 = vunpack.c.0.s8 %v1438
    %v1440 = vlaneseq
    %v1441 = vshrl.u32 %v1440, 7
    %v1442 = vsub.s32 %v1439, %v1441
    %v1443 = vrot.slane %v1436, %v1442
    %v1445 = vmul.f32 %v1426, %v1443
    %v1447 = vlaneseq
    %v1448 = vshrl.u32 %v1447, 7
    %v1449 = vsub.s32 0, %v1448
    %v1450 = vrot.slane %v1445, %v1449
    %v1451 = vlaneseq
    %v1452 = vshrl.u32 %v1451, 7
    %v1453 = vsub.s32 1, %v1452
    %v1454 = vrot.slane %v1445, %v1453
    %v1457 = vadd.f32 %v1276, %v1450
    %v1458 = vadd.f32 %v1277, %v1454
    %v1461 = vcombine.low %v1457, %v1458
    %v1463 = vunpack.c.l.s4 1966171168
    %v1464 = vunpack.c.0.s8 %v1463
    %v1465 = vlaneseq
    %v1466 = vshrl.u32 %v1465, 7
    %v1467 = vsub.s32 %v1464, %v1466
    %v1468 = vrot.slane %v1461, %v1467
    %v1470 = vunpack.c.l.s4 1966171168
    %v1471 = vunpack.c.0.s8 %v1470
    %v1472 = vlaneseq
    %v1473 = vshrl.u32 %v1472, 7
    %v1474 = vsub.s32 %v1471, %v1473
    %v1475 = vrot.slane %v1468, %v1474
    %v1477 = vlaneseq
    %vm1478 = vcmp.ge.s32.totalorder %v1477, 0
    %vm1479 = vcmp.lt.s32.totalorder %v1477, 256
    %vm1480 = vmand %vm1478, %vm1479
    %1481 = vst.msk [vmem:[#allocation2] sm:$0x3] %vm1480, %v1475
    // Predicated region
    $region34: #{tpu_custom_call.1} parent=1 // pred_check
      _
    $region35: #{tpu_custom_call.1} parent=1 // pred_check_branch
      %1483 = sbr.rel (0) target = $region37
    $region36: #{tpu_custom_call.1} parent=1 // pred_region
      %s1485 = ssub.s32 32, 32
      %1486 = vsyncadd [#allocation3], %s1485
      %s1488 = sshll.u32 [#allocation2], 4
      %s1489 = int_to_ptr.vmem [resolvable:$true] %s1488
      %1491 = dma.vmem_to_hbm [thread:$0]  %s1489, 32, %s8, [#allocation3]
    $region37: #{tpu_custom_call.1} parent=1 // pred_fallthru
      _
    // Predicated region
    $region38: #{tpu_custom_call.1} parent=1 // pred_check
      _
    $region39: #{tpu_custom_call.1} parent=1 // pred_check_branch
      %1493 = sbr.rel (0) target = $region41
    $region40: #{tpu_custom_call.1} parent=1 // pred_region
      %1494 = dma.done [#allocation3], 32
    $region41: #{tpu_custom_call.1} parent=1 // pred_fallthru
      _
    %1495 = vsyncpa [#allocation3], 1

</llo_original>
